<compile_context>
chip_gen: v5e
topology: v5e:2x2
jax: 0.10.0
libtpu: 0.0.40
codegen_flags: <defaults>
</compile_context>

<pallas_src>
import jax
import jax.numpy as jnp
from jax.experimental import pallas as pl
from jax.experimental.pallas import tpu as pltpu

H1_PAD = 128   # hidden_1 width 100 -> 128 (lane / MXU aligned)
H2_PAD = 128   # hidden_2 width  80 -> 128


def mlp_kernel(x_ref, w1_ref, b1_ref, w2t_ref, b2_ref, w3_ref, b3_ref, o_ref):
    # x_ref:   (1, N)        batch lane-dense
    # w1_ref:  (H1_PAD, 1)   column vector;   b1_ref: (H1_PAD, 1)
    # w2t_ref: (H2_PAD, H1_PAD) = w2.T zero-padded (one whole MXU tile)
    # b2_ref:  (H2_PAD, 1);  w3_ref: (H2_PAD, 1)
    # b3_ref:  (1, 1) SMEM scalar
    # o_ref:   (1, N)

    # hidden_1: Linear(1,100)+ReLU.  K=1 contraction == outer product -> VPU
    # broadcast multiply, the MXU is not involved.
    h1 = jnp.maximum(w1_ref[...] * x_ref[...] + b1_ref[...], 0.0)        # (H1_PAD, N)

    # hidden_2: Linear(100,80)+ReLU.  The only real matmul: one clean
    # (128,128)x(128,N) MXU pass with f32 accumulation.
    h2 = jnp.dot(w2t_ref[...], h1, preferred_element_type=jnp.float32)   # (H2_PAD, N)
    h2 = jnp.maximum(h2 + b2_ref[...], 0.0)

    # predict: Linear(80,1).  A 1-wide matmul would leave the MXU idle, so use a
    # VPU multiply + sublane (XLU) reduction; add b3 as a scalar before storing.
    y = jnp.sum(h2 * w3_ref[...], axis=0, keepdims=True) + b3_ref[0, 0]  # (1, N)

    # Single lane-dense vreg-row writeback.
    o_ref[...] = y


def pad_params(params):
    """Zero-pad / transpose weights once (host side) to lane & MXU aligned shapes."""
    w1, b1, w2, b2, w3, b3 = params
    h1, h2 = w1.shape[1], w2.shape[1]
    # Zero padding is mathematically inert: padded h1/h2 rows are ReLU(0)=0 and
    # the corresponding w2t / w3 entries are zero.
    w1p  = jnp.zeros((H1_PAD, 1), jnp.float32).at[:h1, 0].set(w1[0])        # (128,1)
    b1p  = jnp.zeros((H1_PAD, 1), jnp.float32).at[:h1, 0].set(b1[0])        # (128,1)
    w2tp = jnp.zeros((H2_PAD, H1_PAD), jnp.float32).at[:h2, :h1].set(w2.T)  # (128,128)
    b2p  = jnp.zeros((H2_PAD, 1), jnp.float32).at[:h2, 0].set(b2[0])        # (128,1)
    w3p  = jnp.zeros((H2_PAD, 1), jnp.float32).at[:h2, 0].set(w3[:, 0])     # (128,1)
    b3p  = jnp.asarray(b3, jnp.float32).reshape(1, 1)                       # (1,1) SMEM
    return w1p, b1p, w2tp, b2p, w3p, b3p


@jax.jit
def net_forward(x, padded_params):
    w1, b1, w2t, b2, w3, b3 = padded_params
    n = x.shape[0]
    # (N,1) -> (1,N): present the batch lane-dense.  No manual N padding --
    # Mosaic pads the full-array block to (8,128) tiles internally.
    x_row = x.reshape(1, n)

    vmem = pl.BlockSpec(memory_space=pltpu.MemorySpace.VMEM)
    smem = pl.BlockSpec(memory_space=pltpu.MemorySpace.SMEM)

    y_row = pl.pallas_call(
        mlp_kernel,
        out_shape=jax.ShapeDtypeStruct((1, n), jnp.float32),
        in_specs=[vmem, vmem, vmem, vmem, vmem, vmem, smem],
        out_specs=vmem,
        cost_estimate=pl.CostEstimate(
            flops=2 * n * H1_PAD * H2_PAD + 6 * n * H1_PAD,
            bytes_accessed=(H1_PAD * H2_PAD + 5 * H1_PAD + 2 * n + 1) * 4,
            transcendentals=0,
        ),
    )(x_row, w1, b1, w2t, b2, w3, b3)

    return y_row.reshape(n, 1)   # matches torch Net output shape (N, 1)


def init_linear(key, fan_in, fan_out):
    # Deterministic init mimicking torch.nn.Linear default: U(-1/sqrt(fan_in), ...)
    kw, kb = jax.random.split(key)
    bound = 1.0 / jnp.sqrt(jnp.float32(fan_in))
    w = jax.random.uniform(kw, (fan_in, fan_out), jnp.float32, -bound, bound)
    b = jax.random.uniform(kb, (1, fan_out), jnp.float32, -bound, bound)
    return w, b


def reference_forward(x, params):
    w1, b1, w2, b2, w3, b3 = params
    h1 = jnp.maximum(x @ w1 + b1, 0.0)
    h2 = jnp.maximum(h1 @ w2 + b2, 0.0)
    return h2 @ w3 + b3


if __name__ == "__main__":
    key = jax.random.PRNGKey(0)
    k1, k2, k3 = jax.random.split(key, 3)

    # Parameters: Linear(1,100), Linear(100,80), Linear(80,1)
    w1, b1 = init_linear(k1, 1, 100)
    w2, b2 = init_linear(k2, 100, 80)
    w3, b3 = init_linear(k3, 80, 1)
    params = (w1, b1, w2, b2, w3, b3)
    padded_params = pad_params(params)

    # Input matching the original script: x = unsqueeze(linspace(-1, 2, 100), 1)
    x = jnp.linspace(-1.0, 2.0, 100, dtype=jnp.float32).reshape(100, 1)

    y = net_forward(x, padded_params)
    jax.block_until_ready(y)

    y_ref = reference_forward(x, params)
    assert y.shape == (100, 1)
    assert jnp.allclose(y, y_ref, atol=1e-5, rtol=1e-5)

    print("KERNEL_OK")
</pallas_src>

<mosaic_0001>
module attributes {stable_mosaic.version = 11 : i64} {
  func.func @mlp_kernel(%arg0: memref<1x100xf32, #tpu.memory_space<vmem>>, %arg1: memref<128x1xf32, #tpu.memory_space<vmem>>, %arg2: memref<128x1xf32, #tpu.memory_space<vmem>>, %arg3: memref<128x128xf32, #tpu.memory_space<vmem>>, %arg4: memref<128x1xf32, #tpu.memory_space<vmem>>, %arg5: memref<128x1xf32, #tpu.memory_space<vmem>>, %arg6: memref<1x1xf32, #tpu.memory_space<smem>>, %arg7: memref<1x100xf32, #tpu.memory_space<vmem>>) attributes {dimension_semantics = [], scalar_prefetch = 0 : i64, scratch_operands = 0 : i64, tpu.core_type = #tpu.core_type<tc>} {
    %c0 = arith.constant 0 : index
    %c0_0 = arith.constant 0 : index
    %0 = vector.load %arg1[%c0, %c0_0] : memref<128x1xf32, #tpu.memory_space<vmem>>, vector<128x1xf32>
    %c0_1 = arith.constant 0 : index
    %c0_2 = arith.constant 0 : index
    %1 = vector.load %arg0[%c0_1, %c0_2] : memref<1x100xf32, #tpu.memory_space<vmem>>, vector<1x100xf32>
    %2 = vector.broadcast %0 : vector<128x1xf32> to vector<128x100xf32>
    %3 = vector.broadcast %1 : vector<1x100xf32> to vector<128x100xf32>
    %4 = arith.mulf %2, %3 : vector<128x100xf32>
    %c0_3 = arith.constant 0 : index
    %c0_4 = arith.constant 0 : index
    %5 = vector.load %arg2[%c0_3, %c0_4] : memref<128x1xf32, #tpu.memory_space<vmem>>, vector<128x1xf32>
    %6 = vector.broadcast %5 : vector<128x1xf32> to vector<128x100xf32>
    %7 = arith.addf %4, %6 : vector<128x100xf32>
    %cst = arith.constant 0.000000e+00 : f32
    %8 = vector.broadcast %cst : f32 to vector<128x100xf32>
    %9 = arith.maximumf %7, %8 : vector<128x100xf32>
    %c0_5 = arith.constant 0 : index
    %c0_6 = arith.constant 0 : index
    %10 = vector.load %arg3[%c0_5, %c0_6] : memref<128x128xf32, #tpu.memory_space<vmem>>, vector<128x128xf32>
    %cst_7 = arith.constant dense<0.000000e+00> : vector<128x100xf32>
    %11 = tpu.matmul %10, %9, %cst_7 {dimension_numbers = #tpu.dot_dimension_numbers<[1], [0], [0], [1], [0, 0, 1, 1], [], []>} : vector<128x128xf32>, vector<128x100xf32>, vector<128x100xf32> -> vector<128x100xf32>
    %c0_8 = arith.constant 0 : index
    %c0_9 = arith.constant 0 : index
    %12 = vector.load %arg4[%c0_8, %c0_9] : memref<128x1xf32, #tpu.memory_space<vmem>>, vector<128x1xf32>
    %13 = vector.broadcast %12 : vector<128x1xf32> to vector<128x100xf32>
    %14 = arith.addf %11, %13 : vector<128x100xf32>
    %cst_10 = arith.constant 0.000000e+00 : f32
    %15 = vector.broadcast %cst_10 : f32 to vector<128x100xf32>
    %16 = arith.maximumf %14, %15 : vector<128x100xf32>
    %c0_11 = arith.constant 0 : index
    %c0_12 = arith.constant 0 : index
    %17 = vector.load %arg5[%c0_11, %c0_12] : memref<128x1xf32, #tpu.memory_space<vmem>>, vector<128x1xf32>
    %18 = vector.broadcast %17 : vector<128x1xf32> to vector<128x100xf32>
    %19 = arith.mulf %16, %18 : vector<128x100xf32>
    %cst_13 = arith.constant dense<0.000000e+00> : vector<100xf32>
    %20 = vector.multi_reduction <add>, %19, %cst_13 [0] : vector<128x100xf32> to vector<100xf32>
    %21 = vector.shape_cast %20 : vector<100xf32> to vector<1x100xf32>
    %c0_14 = arith.constant 0 : index
    %c0_15 = arith.constant 0 : index
    %22 = memref.load %arg6[%c0_14, %c0_15] : memref<1x1xf32, #tpu.memory_space<smem>>
    %23 = vector.broadcast %22 : f32 to vector<1x100xf32>
    %24 = arith.addf %21, %23 : vector<1x100xf32>
    %c0_16 = arith.constant 0 : index
    %c0_17 = arith.constant 0 : index
    %25 = vector.load %arg7[%c0_16, %c0_17] : memref<1x100xf32, #tpu.memory_space<vmem>>, vector<1x100xf32>
    tpu.vector_store %arg7[%c0_16, %c0_17], %24 {strides = array<i32>} : memref<1x100xf32, #tpu.memory_space<vmem>>, vector<1x100xf32>,
    return
  }
}

</mosaic_0001>

<llo_original>
// kernel: net_forward.1
$region0: #{net_forward.1}
  #allocation0 [shape = 'u32[]', space=smem, size = 0x4, offset = 0x4, fixed_abs, tag = 'smem constant byte address 0x4 - core index']
  #allocation1 [shape = 'u32[72,128]{1,0:T(1,128)}', space=vmem, size = 0x9000, scoped, tag = 'internal scratch']
  #allocation2 [shape = 'f32[1,1]{1,0:T(1,128)S(6)}', space=smem, size = 0x200, scoped, tag = 'scoped memory for net_forward.1']
  %s0 = inlined_call_operand.vmem [shape: f32[1,100], index: 0, kind: input, shape index: {}]
  %s1 = inlined_call_operand.vmem [shape: f32[128,1], index: 1, kind: input, shape index: {}]
  %s2 = inlined_call_operand.vmem [shape: f32[128,1], index: 2, kind: input, shape index: {}]
  %s3 = inlined_call_operand.vmem [shape: f32[128,128], index: 3, kind: input, shape index: {}]
  %s4 = inlined_call_operand.vmem [shape: f32[128,1], index: 4, kind: input, shape index: {}]
  %s5 = inlined_call_operand.vmem [shape: f32[128,1], index: 5, kind: input, shape index: {}]
  %s6 = inlined_call_operand.<no memory space> [shape: f32[1,1], index: 6, kind: input, shape index: {}]
  %s7 = inlined_call_operand.hbm [shape: f32[1,100], index: 7, kind: output, shape index: {}]
  %s8 = sld [smem:[#allocation0]]
  $region38: #{net_forward.1} parent=0
    _
  %s10 = ssub.s32 1, %s8
  %s11 = scalar_select 0, %s10, %s8
  %12 = sst [smem:[#allocation2]] %s6
  $region1: #{net_forward.1} parent=0
    #allocation3 [shape = 'u8[512]{0}', space=vmem, size = 0x400, scoped, tag = 'output window, operand 0, single buffered']
    #allocation4 [shape = 's32[1]{0}', space=sflag, size = 0x4, scoped, tag = 'scoped memory for net_forward.1']
    %13 = vsyncpa [#allocation4], 0
    // Predicated region
    $region2: #{net_forward.1} parent=1 // pred_check
      _
    $region3: #{net_forward.1} parent=1 // pred_check_branch
      %15 = sbr.rel (0) target = $region5
    $region4: #{net_forward.1} parent=1 // pred_region
      _
    $region5: #{net_forward.1} parent=1 // pred_fallthru
      _
    // Predicated region
    $region6: #{net_forward.1} parent=1 // pred_check
      _
    $region7: #{net_forward.1} parent=1 // pred_check_branch
      %17 = sbr.rel (0) target = $region9
    $region8: #{net_forward.1} parent=1 // pred_region
      _
    $region9: #{net_forward.1} parent=1 // pred_fallthru
      _
    // Predicated region
    $region10: #{net_forward.1} parent=1 // pred_check
      _
    $region11: #{net_forward.1} parent=1 // pred_check_branch
      %19 = sbr.rel (0) target = $region13
    $region12: #{net_forward.1} parent=1 // pred_region
      _
    $region13: #{net_forward.1} parent=1 // pred_fallthru
      _
    // Predicated region
    $region14: #{net_forward.1} parent=1 // pred_check
      _
    $region15: #{net_forward.1} parent=1 // pred_check_branch
      %21 = sbr.rel (0) target = $region17
    $region16: #{net_forward.1} parent=1 // pred_region
      _
    $region17: #{net_forward.1} parent=1 // pred_fallthru
      _
    // Predicated region
    $region18: #{net_forward.1} parent=1 // pred_check
      _
    $region19: #{net_forward.1} parent=1 // pred_check_branch
      %23 = sbr.rel (0) target = $region21
    $region20: #{net_forward.1} parent=1 // pred_region
      _
    $region21: #{net_forward.1} parent=1 // pred_fallthru
      _
    // Predicated region
    $region22: #{net_forward.1} parent=1 // pred_check
      _
    $region23: #{net_forward.1} parent=1 // pred_check_branch
      %25 = sbr.rel (0) target = $region25
    $region24: #{net_forward.1} parent=1 // pred_region
      _
    $region25: #{net_forward.1} parent=1 // pred_fallthru
      _
    // Predicated region
    $region26: #{net_forward.1} parent=1 // pred_check
      _
    $region27: #{net_forward.1} parent=1 // pred_check_branch
      %27 = sbr.rel (0) target = $region29
    $region28: #{net_forward.1} parent=1 // pred_region
      _
    $region29: #{net_forward.1} parent=1 // pred_fallthru
      _
    %v28 = vld [vmem:[%s1] sm:$0xff]
    %v29 = vld [vmem:[%s1 + $0x8] sm:$0xff]
    %v30 = vld [vmem:[%s1 + $0x10] sm:$0xff]
    %v31 = vld [vmem:[%s1 + $0x18] sm:$0xff]
    %v32 = vld [vmem:[%s1 + $0x20] sm:$0xff]
    %v33 = vld [vmem:[%s1 + $0x28] sm:$0xff]
    %v34 = vld [vmem:[%s1 + $0x30] sm:$0xff]
    %v35 = vld [vmem:[%s1 + $0x38] sm:$0xff]
    %v36 = vld [vmem:[%s1 + $0x40] sm:$0xff]
    %v37 = vld [vmem:[%s1 + $0x48] sm:$0xff]
    %v38 = vld [vmem:[%s1 + $0x50] sm:$0xff]
    %v39 = vld [vmem:[%s1 + $0x58] sm:$0xff]
    %v40 = vld [vmem:[%s1 + $0x60] sm:$0xff]
    %v41 = vld [vmem:[%s1 + $0x68] sm:$0xff]
    %v42 = vld [vmem:[%s1 + $0x70] sm:$0xff]
    %v43 = vld [vmem:[%s1 + $0x78] sm:$0xff]
    %v44 = vld [vmem:[%s0] sm:$0x1]
    %46 = vset.pattern.permute.xlu0 0
    %47 = vperm.xlu0 %46, %v28
    %v48 = vpop.permute.xlu0 %47
    %51 = vset.pattern.permute.xlu0 0
    %52 = vperm.xlu0 %51, %v29
    %v53 = vpop.permute.xlu0 %52
    %56 = vset.pattern.permute.xlu0 0
    %57 = vperm.xlu0 %56, %v30
    %v58 = vpop.permute.xlu0 %57
    %61 = vset.pattern.permute.xlu0 0
    %62 = vperm.xlu0 %61, %v31
    %v63 = vpop.permute.xlu0 %62
    %66 = vset.pattern.permute.xlu0 0
    %67 = vperm.xlu0 %66, %v32
    %v68 = vpop.permute.xlu0 %67
    %71 = vset.pattern.permute.xlu0 0
    %72 = vperm.xlu0 %71, %v33
    %v73 = vpop.permute.xlu0 %72
    %76 = vset.pattern.permute.xlu0 0
    %77 = vperm.xlu0 %76, %v34
    %v78 = vpop.permute.xlu0 %77
    %81 = vset.pattern.permute.xlu0 0
    %82 = vperm.xlu0 %81, %v35
    %v83 = vpop.permute.xlu0 %82
    %86 = vset.pattern.permute.xlu0 0
    %87 = vperm.xlu0 %86, %v36
    %v88 = vpop.permute.xlu0 %87
    %91 = vset.pattern.permute.xlu0 0
    %92 = vperm.xlu0 %91, %v37
    %v93 = vpop.permute.xlu0 %92
    %96 = vset.pattern.permute.xlu0 0
    %97 = vperm.xlu0 %96, %v38
    %v98 = vpop.permute.xlu0 %97
    %101 = vset.pattern.permute.xlu0 0
    %102 = vperm.xlu0 %101, %v39
    %v103 = vpop.permute.xlu0 %102
    %106 = vset.pattern.permute.xlu0 0
    %107 = vperm.xlu0 %106, %v40
    %v108 = vpop.permute.xlu0 %107
    %111 = vset.pattern.permute.xlu0 0
    %112 = vperm.xlu0 %111, %v41
    %v113 = vpop.permute.xlu0 %112
    %116 = vset.pattern.permute.xlu0 0
    %117 = vperm.xlu0 %116, %v42
    %v118 = vpop.permute.xlu0 %117
    %121 = vset.pattern.permute.xlu0 0
    %122 = vperm.xlu0 %121, %v43
    %v123 = vpop.permute.xlu0 %122
    %v126 = vperm.slane %v44, 0
    %v128 = vmul.f32 %v48, %v126
    %v129 = vmul.f32 %v53, %v126
    %v130 = vmul.f32 %v58, %v126
    %v131 = vmul.f32 %v63, %v126
    %v132 = vmul.f32 %v68, %v126
    %v133 = vmul.f32 %v73, %v126
    %v134 = vmul.f32 %v78, %v126
    %v135 = vmul.f32 %v83, %v126
    %v136 = vmul.f32 %v88, %v126
    %v137 = vmul.f32 %v93, %v126
    %v138 = vmul.f32 %v98, %v126
    %v139 = vmul.f32 %v103, %v126
    %v140 = vmul.f32 %v108, %v126
    %v141 = vmul.f32 %v113, %v126
    %v142 = vmul.f32 %v118, %v126
    %v143 = vmul.f32 %v123, %v126
    %v144 = vld [vmem:[%s2] sm:$0xff]
    %v145 = vld [vmem:[%s2 + $0x8] sm:$0xff]
    %v146 = vld [vmem:[%s2 + $0x10] sm:$0xff]
    %v147 = vld [vmem:[%s2 + $0x18] sm:$0xff]
    %v148 = vld [vmem:[%s2 + $0x20] sm:$0xff]
    %v149 = vld [vmem:[%s2 + $0x28] sm:$0xff]
    %v150 = vld [vmem:[%s2 + $0x30] sm:$0xff]
    %v151 = vld [vmem:[%s2 + $0x38] sm:$0xff]
    %v152 = vld [vmem:[%s2 + $0x40] sm:$0xff]
    %v153 = vld [vmem:[%s2 + $0x48] sm:$0xff]
    %v154 = vld [vmem:[%s2 + $0x50] sm:$0xff]
    %v155 = vld [vmem:[%s2 + $0x58] sm:$0xff]
    %v156 = vld [vmem:[%s2 + $0x60] sm:$0xff]
    %v157 = vld [vmem:[%s2 + $0x68] sm:$0xff]
    %v158 = vld [vmem:[%s2 + $0x70] sm:$0xff]
    %v159 = vld [vmem:[%s2 + $0x78] sm:$0xff]
    %161 = vset.pattern.permute.xlu0 0
    %162 = vperm.xlu0 %161, %v144
    %v163 = vpop.permute.xlu0 %162
    %166 = vset.pattern.permute.xlu0 0
    %167 = vperm.xlu0 %166, %v145
    %v168 = vpop.permute.xlu0 %167
    %171 = vset.pattern.permute.xlu0 0
    %172 = vperm.xlu0 %171, %v146
    %v173 = vpop.permute.xlu0 %172
    %176 = vset.pattern.permute.xlu0 0
    %177 = vperm.xlu0 %176, %v147
    %v178 = vpop.permute.xlu0 %177
    %181 = vset.pattern.permute.xlu0 0
    %182 = vperm.xlu0 %181, %v148
    %v183 = vpop.permute.xlu0 %182
    %186 = vset.pattern.permute.xlu0 0
    %187 = vperm.xlu0 %186, %v149
    %v188 = vpop.permute.xlu0 %187
    %191 = vset.pattern.permute.xlu0 0
    %192 = vperm.xlu0 %191, %v150
    %v193 = vpop.permute.xlu0 %192
    %196 = vset.pattern.permute.xlu0 0
    %197 = vperm.xlu0 %196, %v151
    %v198 = vpop.permute.xlu0 %197
    %201 = vset.pattern.permute.xlu0 0
    %202 = vperm.xlu0 %201, %v152
    %v203 = vpop.permute.xlu0 %202
    %206 = vset.pattern.permute.xlu0 0
    %207 = vperm.xlu0 %206, %v153
    %v208 = vpop.permute.xlu0 %207
    %211 = vset.pattern.permute.xlu0 0
    %212 = vperm.xlu0 %211, %v154
    %v213 = vpop.permute.xlu0 %212
    %216 = vset.pattern.permute.xlu0 0
    %217 = vperm.xlu0 %216, %v155
    %v218 = vpop.permute.xlu0 %217
    %221 = vset.pattern.permute.xlu0 0
    %222 = vperm.xlu0 %221, %v156
    %v223 = vpop.permute.xlu0 %222
    %226 = vset.pattern.permute.xlu0 0
    %227 = vperm.xlu0 %226, %v157
    %v228 = vpop.permute.xlu0 %227
    %231 = vset.pattern.permute.xlu0 0
    %232 = vperm.xlu0 %231, %v158
    %v233 = vpop.permute.xlu0 %232
    %236 = vset.pattern.permute.xlu0 0
    %237 = vperm.xlu0 %236, %v159
    %v238 = vpop.permute.xlu0 %237
    %v240 = vadd.f32 %v128, %v163
    %v241 = vadd.f32 %v129, %v168
    %v242 = vadd.f32 %v130, %v173
    %v243 = vadd.f32 %v131, %v178
    %v244 = vadd.f32 %v132, %v183
    %v245 = vadd.f32 %v133, %v188
    %v246 = vadd.f32 %v134, %v193
    %v247 = vadd.f32 %v135, %v198
    %v248 = vadd.f32 %v136, %v203
    %v249 = vadd.f32 %v137, %v208
    %v250 = vadd.f32 %v138, %v213
    %v251 = vadd.f32 %v139, %v218
    %v252 = vadd.f32 %v140, %v223
    %v253 = vadd.f32 %v141, %v228
    %v254 = vadd.f32 %v142, %v233
    %v255 = vadd.f32 %v143, %v238
    %v256 = vmax.f32 %v240, 0.0
    %v257 = vmax.f32 %v241, 0.0
    %v258 = vmax.f32 %v242, 0.0
    %v259 = vmax.f32 %v243, 0.0
    %v260 = vmax.f32 %v244, 0.0
    %v261 = vmax.f32 %v245, 0.0
    %v262 = vmax.f32 %v246, 0.0
    %v263 = vmax.f32 %v247, 0.0
    %v264 = vmax.f32 %v248, 0.0
    %v265 = vmax.f32 %v249, 0.0
    %v266 = vmax.f32 %v250, 0.0
    %v267 = vmax.f32 %v251, 0.0
    %v268 = vmax.f32 %v252, 0.0
    %v269 = vmax.f32 %v253, 0.0
    %v270 = vmax.f32 %v254, 0.0
    %v271 = vmax.f32 %v255, 0.0
    %v272 = vld [vmem:[%s3] sm:$0xff]
    %v273 = vld [vmem:[%s3 + $0x8] sm:$0xff]
    %v274 = vld [vmem:[%s3 + $0x10] sm:$0xff]
    %v275 = vld [vmem:[%s3 + $0x18] sm:$0xff]
    %v276 = vld [vmem:[%s3 + $0x20] sm:$0xff]
    %v277 = vld [vmem:[%s3 + $0x28] sm:$0xff]
    %v278 = vld [vmem:[%s3 + $0x30] sm:$0xff]
    %v279 = vld [vmem:[%s3 + $0x38] sm:$0xff]
    %v280 = vld [vmem:[%s3 + $0x40] sm:$0xff]
    %v281 = vld [vmem:[%s3 + $0x48] sm:$0xff]
    %v282 = vld [vmem:[%s3 + $0x50] sm:$0xff]
    %v283 = vld [vmem:[%s3 + $0x58] sm:$0xff]
    %v284 = vld [vmem:[%s3 + $0x60] sm:$0xff]
    %v285 = vld [vmem:[%s3 + $0x68] sm:$0xff]
    %v286 = vld [vmem:[%s3 + $0x70] sm:$0xff]
    %v287 = vld [vmem:[%s3 + $0x78] sm:$0xff]
    %v288 = vld [vmem:[%s4] sm:$0xff]
    %v289 = vld [vmem:[%s4 + $0x8] sm:$0xff]
    %v290 = vld [vmem:[%s4 + $0x10] sm:$0xff]
    %v291 = vld [vmem:[%s4 + $0x18] sm:$0xff]
    %v292 = vld [vmem:[%s4 + $0x20] sm:$0xff]
    %v293 = vld [vmem:[%s4 + $0x28] sm:$0xff]
    %v294 = vld [vmem:[%s4 + $0x30] sm:$0xff]
    %v295 = vld [vmem:[%s4 + $0x38] sm:$0xff]
    %v296 = vld [vmem:[%s4 + $0x40] sm:$0xff]
    %v297 = vld [vmem:[%s4 + $0x48] sm:$0xff]
    %v298 = vld [vmem:[%s4 + $0x50] sm:$0xff]
    %v299 = vld [vmem:[%s4 + $0x58] sm:$0xff]
    %v300 = vld [vmem:[%s4 + $0x60] sm:$0xff]
    %v301 = vld [vmem:[%s4 + $0x68] sm:$0xff]
    %v302 = vld [vmem:[%s4 + $0x70] sm:$0xff]
    %v303 = vld [vmem:[%s4 + $0x78] sm:$0xff]
    %305 = vset.pattern.permute.xlu0 0
    %306 = vperm.xlu0 %305, %v288
    %v307 = vpop.permute.xlu0 %306
    %310 = vset.pattern.permute.xlu0 0
    %311 = vperm.xlu0 %310, %v289
    %v312 = vpop.permute.xlu0 %311
    %315 = vset.pattern.permute.xlu0 0
    %316 = vperm.xlu0 %315, %v290
    %v317 = vpop.permute.xlu0 %316
    %320 = vset.pattern.permute.xlu0 0
    %321 = vperm.xlu0 %320, %v291
    %v322 = vpop.permute.xlu0 %321
    %325 = vset.pattern.permute.xlu0 0
    %326 = vperm.xlu0 %325, %v292
    %v327 = vpop.permute.xlu0 %326
    %330 = vset.pattern.permute.xlu0 0
    %331 = vperm.xlu0 %330, %v293
    %v332 = vpop.permute.xlu0 %331
    %335 = vset.pattern.permute.xlu0 0
    %336 = vperm.xlu0 %335, %v294
    %v337 = vpop.permute.xlu0 %336
    %340 = vset.pattern.permute.xlu0 0
    %341 = vperm.xlu0 %340, %v295
    %v342 = vpop.permute.xlu0 %341
    %345 = vset.pattern.permute.xlu0 0
    %346 = vperm.xlu0 %345, %v296
    %v347 = vpop.permute.xlu0 %346
    %350 = vset.pattern.permute.xlu0 0
    %351 = vperm.xlu0 %350, %v297
    %v352 = vpop.permute.xlu0 %351
    %355 = vset.pattern.permute.xlu0 0
    %356 = vperm.xlu0 %355, %v298
    %v357 = vpop.permute.xlu0 %356
    %360 = vset.pattern.permute.xlu0 0
    %361 = vperm.xlu0 %360, %v299
    %v362 = vpop.permute.xlu0 %361
    %365 = vset.pattern.permute.xlu0 0
    %366 = vperm.xlu0 %365, %v300
    %v367 = vpop.permute.xlu0 %366
    %370 = vset.pattern.permute.xlu0 0
    %371 = vperm.xlu0 %370, %v301
    %v372 = vpop.permute.xlu0 %371
    %375 = vset.pattern.permute.xlu0 0
    %376 = vperm.xlu0 %375, %v302
    %v377 = vpop.permute.xlu0 %376
    %380 = vset.pattern.permute.xlu0 0
    %381 = vperm.xlu0 %380, %v303
    %v382 = vpop.permute.xlu0 %381
    %384 = vmatpush.msra.mxu0 %v271
    %385 = vmatpush.msra.mxu0 %v270
    %386 = vmatpush.msra.mxu0 %v269
    %387 = vmatpush.msra.mxu0 %v268
    %388 = vmatpush.msra.mxu0 %v267
    %389 = vmatpush.msra.mxu0 %v266
    %390 = vmatpush.msra.mxu0 %v265
    %391 = vmatpush.msra.mxu0 %v264
    %392 = vmatpush.msra.mxu0 %v263
    %393 = vmatpush.msra.mxu0 %v262
    %394 = vmatpush.msra.mxu0 %v261
    %395 = vmatpush.msra.mxu0 %v260
    %396 = vmatpush.msra.mxu0 %v259
    %397 = vmatpush.msra.mxu0 %v258
    %398 = vmatpush.msra.mxu0 %v257
    %399 = vmatpush.msra.mxu0 %v256
    %400 = vmatmul.f32.gmra.mxu0 %v272
    %v401 = vpop.f32.mrf.mxu0
    %v402 = vadd.f32 %v307, %v401
    %403 = vmatmul.f32.gmra.mxu0 %v273
    %v404 = vpop.f32.mrf.mxu0
    %v405 = vadd.f32 %v312, %v404
    %406 = vmatmul.f32.gmra.mxu0 %v274
    %v407 = vpop.f32.mrf.mxu0
    %v408 = vadd.f32 %v317, %v407
    %409 = vmatmul.f32.gmra.mxu0 %v275
    %v410 = vpop.f32.mrf.mxu0
    %v411 = vadd.f32 %v322, %v410
    %412 = vmatmul.f32.gmra.mxu0 %v276
    %v413 = vpop.f32.mrf.mxu0
    %v414 = vadd.f32 %v327, %v413
    %415 = vmatmul.f32.gmra.mxu0 %v277
    %v416 = vpop.f32.mrf.mxu0
    %v417 = vadd.f32 %v332, %v416
    %418 = vmatmul.f32.gmra.mxu0 %v278
    %v419 = vpop.f32.mrf.mxu0
    %v420 = vadd.f32 %v337, %v419
    %421 = vmatmul.f32.gmra.mxu0 %v279
    %v422 = vpop.f32.mrf.mxu0
    %v423 = vadd.f32 %v342, %v422
    %424 = vmatmul.f32.gmra.mxu0 %v280
    %v425 = vpop.f32.mrf.mxu0
    %v426 = vadd.f32 %v347, %v425
    %427 = vmatmul.f32.gmra.mxu0 %v281
    %v428 = vpop.f32.mrf.mxu0
    %v429 = vadd.f32 %v352, %v428
    %430 = vmatmul.f32.gmra.mxu0 %v282
    %v431 = vpop.f32.mrf.mxu0
    %v432 = vadd.f32 %v357, %v431
    %433 = vmatmul.f32.gmra.mxu0 %v283
    %v434 = vpop.f32.mrf.mxu0
    %v435 = vadd.f32 %v362, %v434
    %436 = vmatmul.f32.gmra.mxu0 %v284
    %v437 = vpop.f32.mrf.mxu0
    %v438 = vadd.f32 %v367, %v437
    %439 = vmatmul.f32.gmra.mxu0 %v285
    %v440 = vpop.f32.mrf.mxu0
    %v441 = vadd.f32 %v372, %v440
    %442 = vmatmul.f32.gmra.mxu0 %v286
    %v443 = vpop.f32.mrf.mxu0
    %v444 = vadd.f32 %v377, %v443
    %445 = vmatmul.f32.gmra.mxu0 %v287
    %v446 = vpop.f32.mrf.mxu0
    %v447 = vadd.f32 %v382, %v446
    %448 = vdwg.mxu0
    %v449 = vmax.f32 %v402, 0.0
    %v450 = vmax.f32 %v405, 0.0
    %v451 = vmax.f32 %v408, 0.0
    %v452 = vmax.f32 %v411, 0.0
    %v453 = vmax.f32 %v414, 0.0
    %v454 = vmax.f32 %v417, 0.0
    %v455 = vmax.f32 %v420, 0.0
    %v456 = vmax.f32 %v423, 0.0
    %v457 = vmax.f32 %v426, 0.0
    %v458 = vmax.f32 %v429, 0.0
    %v459 = vmax.f32 %v432, 0.0
    %v460 = vmax.f32 %v435, 0.0
    %v461 = vmax.f32 %v438, 0.0
    %v462 = vmax.f32 %v441, 0.0
    %v463 = vmax.f32 %v444, 0.0
    %v464 = vmax.f32 %v447, 0.0
    %v465 = vld [vmem:[%s5] sm:$0xff]
    %v466 = vld [vmem:[%s5 + $0x8] sm:$0xff]
    %v467 = vld [vmem:[%s5 + $0x10] sm:$0xff]
    %v468 = vld [vmem:[%s5 + $0x18] sm:$0xff]
    %v469 = vld [vmem:[%s5 + $0x20] sm:$0xff]
    %v470 = vld [vmem:[%s5 + $0x28] sm:$0xff]
    %v471 = vld [vmem:[%s5 + $0x30] sm:$0xff]
    %v472 = vld [vmem:[%s5 + $0x38] sm:$0xff]
    %v473 = vld [vmem:[%s5 + $0x40] sm:$0xff]
    %v474 = vld [vmem:[%s5 + $0x48] sm:$0xff]
    %v475 = vld [vmem:[%s5 + $0x50] sm:$0xff]
    %v476 = vld [vmem:[%s5 + $0x58] sm:$0xff]
    %v477 = vld [vmem:[%s5 + $0x60] sm:$0xff]
    %v478 = vld [vmem:[%s5 + $0x68] sm:$0xff]
    %v479 = vld [vmem:[%s5 + $0x70] sm:$0xff]
    %v480 = vld [vmem:[%s5 + $0x78] sm:$0xff]
    %482 = vset.pattern.permute.xlu0 0
    %483 = vperm.xlu0 %482, %v465
    %v484 = vpop.permute.xlu0 %483
    %487 = vset.pattern.permute.xlu0 0
    %488 = vperm.xlu0 %487, %v466
    %v489 = vpop.permute.xlu0 %488
    %492 = vset.pattern.permute.xlu0 0
    %493 = vperm.xlu0 %492, %v467
    %v494 = vpop.permute.xlu0 %493
    %497 = vset.pattern.permute.xlu0 0
    %498 = vperm.xlu0 %497, %v468
    %v499 = vpop.permute.xlu0 %498
    %502 = vset.pattern.permute.xlu0 0
    %503 = vperm.xlu0 %502, %v469
    %v504 = vpop.permute.xlu0 %503
    %507 = vset.pattern.permute.xlu0 0
    %508 = vperm.xlu0 %507, %v470
    %v509 = vpop.permute.xlu0 %508
    %512 = vset.pattern.permute.xlu0 0
    %513 = vperm.xlu0 %512, %v471
    %v514 = vpop.permute.xlu0 %513
    %517 = vset.pattern.permute.xlu0 0
    %518 = vperm.xlu0 %517, %v472
    %v519 = vpop.permute.xlu0 %518
    %522 = vset.pattern.permute.xlu0 0
    %523 = vperm.xlu0 %522, %v473
    %v524 = vpop.permute.xlu0 %523
    %527 = vset.pattern.permute.xlu0 0
    %528 = vperm.xlu0 %527, %v474
    %v529 = vpop.permute.xlu0 %528
    %532 = vset.pattern.permute.xlu0 0
    %533 = vperm.xlu0 %532, %v475
    %v534 = vpop.permute.xlu0 %533
    %537 = vset.pattern.permute.xlu0 0
    %538 = vperm.xlu0 %537, %v476
    %v539 = vpop.permute.xlu0 %538
    %542 = vset.pattern.permute.xlu0 0
    %543 = vperm.xlu0 %542, %v477
    %v544 = vpop.permute.xlu0 %543
    %547 = vset.pattern.permute.xlu0 0
    %548 = vperm.xlu0 %547, %v478
    %v549 = vpop.permute.xlu0 %548
    %552 = vset.pattern.permute.xlu0 0
    %553 = vperm.xlu0 %552, %v479
    %v554 = vpop.permute.xlu0 %553
    %557 = vset.pattern.permute.xlu0 0
    %558 = vperm.xlu0 %557, %v480
    %v559 = vpop.permute.xlu0 %558
    %v561 = vmul.f32 %v449, %v484
    %v562 = vmul.f32 %v450, %v489
    %v563 = vmul.f32 %v451, %v494
    %v564 = vmul.f32 %v452, %v499
    %v565 = vmul.f32 %v453, %v504
    %v566 = vmul.f32 %v454, %v509
    %v567 = vmul.f32 %v455, %v514
    %v568 = vmul.f32 %v456, %v519
    %v569 = vmul.f32 %v457, %v524
    %v570 = vmul.f32 %v458, %v529
    %v571 = vmul.f32 %v459, %v534
    %v572 = vmul.f32 %v460, %v539
    %v573 = vmul.f32 %v461, %v544
    %v574 = vmul.f32 %v462, %v549
    %v575 = vmul.f32 %v463, %v554
    %v576 = vmul.f32 %v464, %v559
    %vm577 = vcmask 818176
    %v578 = vsel %vm577, %v561, 0.0
    %v579 = vsel %vm577, %v562, 0.0
    %v580 = vadd.f32 %v578, %v579
    %v581 = vsel %vm577, %v563, 0.0
    %v582 = vadd.f32 %v580, %v581
    %v583 = vsel %vm577, %v564, 0.0
    %v584 = vadd.f32 %v582, %v583
    %v585 = vsel %vm577, %v565, 0.0
    %v586 = vadd.f32 %v584, %v585
    %v587 = vsel %vm577, %v566, 0.0
    %v588 = vadd.f32 %v586, %v587
    %v589 = vsel %vm577, %v567, 0.0
    %v590 = vadd.f32 %v588, %v589
    %v591 = vsel %vm577, %v568, 0.0
    %v592 = vadd.f32 %v590, %v591
    %v593 = vsel %vm577, %v569, 0.0
    %v594 = vadd.f32 %v592, %v593
    %v595 = vsel %vm577, %v570, 0.0
    %v596 = vadd.f32 %v594, %v595
    %v597 = vsel %vm577, %v571, 0.0
    %v598 = vadd.f32 %v596, %v597
    %v599 = vsel %vm577, %v572, 0.0
    %v600 = vadd.f32 %v598, %v599
    %v601 = vsel %vm577, %v573, 0.0
    %v602 = vadd.f32 %v600, %v601
    %v603 = vsel %vm577, %v574, 0.0
    %v604 = vadd.f32 %v602, %v603
    %v605 = vsel %vm577, %v575, 0.0
    %v606 = vadd.f32 %v604, %v605
    %v607 = vsel %vm577, %v576, 0.0
    %v608 = vadd.f32 %v606, %v607
    %v609 = vrot.slane %v608, 4
    %v610 = vadd.f32 %v608, %v609
    %v611 = vrot.slane %v610, 2
    %v612 = vadd.f32 %v610, %v611
    %v613 = vrot.slane %v612, 1
    %v614 = vadd.f32 %v612, %v613
    %s615 = sld [smem:[#allocation2]]
    %v616 = vstv %s615
    %v617 = vadd.f32 %v614, %v616
    %vm618 = vcmask 811008
    %619 = vst.msk [vmem:[#allocation3] sm:$0x1] %vm618, %v617
    // Predicated region
    $region30: #{net_forward.1} parent=1 // pred_check
      _
    $region31: #{net_forward.1} parent=1 // pred_check_branch
      %621 = sbr.rel (0) target = $region33
    $region32: #{net_forward.1} parent=1 // pred_region
      %623 = vsyncadd [#allocation4], 0
      %s625 = sshll.u32 [#allocation3], 4
      %s626 = int_to_ptr.vmem [resolvable:$true] %s625
      %s627 = sshll.u32 %s7, 4
      %s628 = int_to_ptr.hbm [resolvable:$true] %s627
      %630 = dma.vmem_to_hbm [thread:$0]  %s626, 16, %s628, [#allocation4]
    $region33: #{net_forward.1} parent=1 // pred_fallthru
      _
    // Predicated region
    $region34: #{net_forward.1} parent=1 // pred_check
      _
    $region35: #{net_forward.1} parent=1 // pred_check_branch
      %632 = sbr.rel (0) target = $region37
    $region36: #{net_forward.1} parent=1 // pred_region
      %634 = dma.done [#allocation4], 16
    $region37: #{net_forward.1} parent=1 // pred_fallthru
      _
    %635 = vsyncpa [#allocation4], 1

</llo_original>
